<compile_context>
chip_gen: v6e
topology: v6e:2x2x1
jax: 0.10.0
libtpu: 0.0.40
codegen_flags: <defaults>
</compile_context>

<pallas_src>
import jax
import jax.numpy as jnp
from jax import lax
from jax.experimental import pallas as pl
from jax.experimental.pallas import tpu as pltpu

EPS = 1e-5


def _basic_block_kernel(x_ref, g1_ref, b1_ref, w1_ref, g2_ref, b2_ref, w2_ref, out_ref):
    # x_ref : (Cin,  M)  f32   channels on sublanes, N*H*W on lanes (lane-dense)
    # g1/b1 : (Cin,  1)  f32   bn1 gamma/beta
    # w1    : (Cmid, Cin) f32  conv1 1x1 weight (O, I)
    # g2/b2 : (Cmid, 1)  f32   bn2 gamma/beta
    # w2    : (Cout, Cmid) f32 conv2 1x1 weight (O, I)
    # out   : (Cout, M)  f32   relu(conv2(bn2(conv1(relu(bn1(x))))))
    x = x_ref[...]

    # ---- BN1 (training-mode batch stats over N*H*W, biased var) + ReLU ----
    mean1 = jnp.mean(x, axis=-1, keepdims=True)                 # (Cin, 1)
    xc1 = x - mean1
    var1 = jnp.mean(xc1 * xc1, axis=-1, keepdims=True)          # mean-subtracted form
    scale1 = g1_ref[...] * lax.rsqrt(var1 + EPS)
    h = jnp.maximum(xc1 * scale1 + b1_ref[...], 0.0)            # (Cin, M)

    # ---- conv1: 1x1, no bias -> single MXU matmul ----
    y = jnp.dot(w1_ref[...], h, preferred_element_type=jnp.float32)   # (Cmid, M)

    # ---- BN2 (no ReLU between bn2 and conv2) ----
    mean2 = jnp.mean(y, axis=-1, keepdims=True)                 # (Cmid, 1)
    yc2 = y - mean2
    var2 = jnp.mean(yc2 * yc2, axis=-1, keepdims=True)
    scale2 = g2_ref[...] * lax.rsqrt(var2 + EPS)
    y2 = yc2 * scale2 + b2_ref[...]                             # (Cmid, M)

    # ---- conv2: 1x1, no bias -> single MXU matmul, then ReLU ----
    z = jnp.dot(w2_ref[...], y2, preferred_element_type=jnp.float32)  # (Cout, M)
    out_ref[...] = jnp.maximum(z, 0.0)


def basic_block_forward(x_nchw, params):
    """BasicBlock forward. Input/output are NCHW to match the PyTorch module."""
    gamma1, beta1, w1, gamma2, beta2, w2 = params
    N, Cin, H, W = x_nchw.shape
    M = N * H * W
    Cmid = w1.shape[0]
    Cout = w2.shape[0]

    # channels-first slab (C, N*H*W): lane axis = N*H*W (lane-dense). Glue only.
    x_cm = jnp.transpose(x_nchw, (1, 0, 2, 3)).reshape(Cin, M).astype(jnp.float32)

    out_cm = pl.pallas_call(
        _basic_block_kernel,
        out_shape=jax.ShapeDtypeStruct((Cout, M), jnp.float32),
        in_specs=[pl.BlockSpec(memory_space=pltpu.MemorySpace.VMEM)] * 7,
        out_specs=pl.BlockSpec(memory_space=pltpu.MemorySpace.VMEM),
    )(
        x_cm,
        gamma1.reshape(Cin, 1).astype(jnp.float32),
        beta1.reshape(Cin, 1).astype(jnp.float32),
        w1.astype(jnp.float32),
        gamma2.reshape(Cmid, 1).astype(jnp.float32),
        beta2.reshape(Cmid, 1).astype(jnp.float32),
        w2.astype(jnp.float32),
    )

    out_nchw = jnp.transpose(out_cm.reshape(Cout, N, H, W), (1, 0, 2, 3))
    # torch.cat([x, out], dim=1): channel concat is layout glue, done here.
    return jnp.concatenate([x_nchw, out_nchw], axis=1)


def init_basic_block_params(key, in_planes, out_planes=24, g_rate=3):
    """Synthetic parameters matching BasicBlock(in_planes, out_planes, g_rate)."""
    mid = out_planes * g_rate
    k1, k2 = jax.random.split(key)
    bound1 = 1.0 / (in_planes ** 0.5)           # Conv2d default init scale (fan_in = Cin*1*1)
    w1 = jax.random.uniform(k1, (mid, in_planes), jnp.float32, -bound1, bound1)
    bound2 = 1.0 / (mid ** 0.5)
    w2 = jax.random.uniform(k2, (out_planes, mid), jnp.float32, -bound2, bound2)
    gamma1 = jnp.ones((in_planes,), jnp.float32)   # BatchNorm2d default weight
    beta1 = jnp.zeros((in_planes,), jnp.float32)   # BatchNorm2d default bias
    gamma2 = jnp.ones((mid,), jnp.float32)
    beta2 = jnp.zeros((mid,), jnp.float32)
    return (gamma1, beta1, w1, gamma2, beta2, w2)


def basic_block_ref(x, params):
    """Pure-JAX reference of the PyTorch forward (training-mode BN)."""
    gamma1, beta1, w1, gamma2, beta2, w2 = params

    def bn(t, g, b):
        mean = jnp.mean(t, axis=(0, 2, 3), keepdims=True)
        var = jnp.mean((t - mean) ** 2, axis=(0, 2, 3), keepdims=True)
        return (t - mean) * (g.reshape(1, -1, 1, 1) * lax.rsqrt(var + EPS)) + b.reshape(1, -1, 1, 1)

    h = jnp.maximum(bn(x, gamma1, beta1), 0.0)
    y = jnp.einsum("oc,nchw->nohw", w1, h, precision=lax.Precision.HIGHEST)
    y = bn(y, gamma2, beta2)
    z = jnp.einsum("oc,nchw->nohw", w2, y, precision=lax.Precision.HIGHEST)
    z = jnp.maximum(z, 0.0)
    return jnp.concatenate([x, z], axis=1)


if __name__ == "__main__":
    key = jax.random.PRNGKey(0)
    kx, kp = jax.random.split(key)

    # Small shapes consistent with the module: in_planes=4, out_planes=24, g_rate=3.
    in_planes, out_planes, g_rate = 4, 24, 3
    N, H, W = 2, 16, 16

    x = jax.random.normal(kx, (N, in_planes, H, W), dtype=jnp.float32)  # NCHW
    params = init_basic_block_params(kp, in_planes, out_planes, g_rate)

    out = basic_block_forward(x, params)
    out = jax.block_until_ready(out)

    assert out.shape == (N, in_planes + out_planes, H, W), out.shape
    assert out.dtype == jnp.float32
    # Input channels pass through the concat unchanged.
    assert bool(jnp.array_equal(out[:, :in_planes], x))
    # Numerical check against the pure-JAX reference.
    ref = basic_block_ref(x, params)
    max_err = float(jnp.max(jnp.abs(out - ref)))
    assert max_err < 5e-2, max_err

    print("KERNEL_OK")
</pallas_src>

<mosaic_0001>
module attributes {stable_mosaic.version = 11 : i64} {
  func.func @_basic_block_kernel(%arg0: memref<4x512xf32, #tpu.memory_space<vmem>>, %arg1: memref<4x1xf32, #tpu.memory_space<vmem>>, %arg2: memref<4x1xf32, #tpu.memory_space<vmem>>, %arg3: memref<72x4xf32, #tpu.memory_space<vmem>>, %arg4: memref<72x1xf32, #tpu.memory_space<vmem>>, %arg5: memref<72x1xf32, #tpu.memory_space<vmem>>, %arg6: memref<24x72xf32, #tpu.memory_space<vmem>>, %arg7: memref<24x512xf32, #tpu.memory_space<vmem>>) attributes {dimension_semantics = [], scalar_prefetch = 0 : i64, scratch_operands = 0 : i64, tpu.core_type = #tpu.core_type<tc>} {
    %c0 = arith.constant 0 : index
    %c0_0 = arith.constant 0 : index
    %0 = vector.load %arg0[%c0, %c0_0] : memref<4x512xf32, #tpu.memory_space<vmem>>, vector<4x512xf32>
    %cst = arith.constant dense<0.000000e+00> : vector<4xf32>
    %1 = vector.multi_reduction <add>, %0, %cst [1] : vector<4x512xf32> to vector<4xf32>
    %2 = vector.shape_cast %1 : vector<4xf32> to vector<4x1xf32>
    %cst_1 = arith.constant 5.120000e+02 : f32
    %3 = vector.broadcast %cst_1 : f32 to vector<4x1xf32>
    %4 = arith.divf %2, %3 : vector<4x1xf32>
    %5 = vector.broadcast %4 : vector<4x1xf32> to vector<4x512xf32>
    %6 = arith.subf %0, %5 : vector<4x512xf32>
    %7 = arith.mulf %6, %6 : vector<4x512xf32>
    %cst_2 = arith.constant dense<0.000000e+00> : vector<4xf32>
    %8 = vector.multi_reduction <add>, %7, %cst_2 [1] : vector<4x512xf32> to vector<4xf32>
    %9 = vector.shape_cast %8 : vector<4xf32> to vector<4x1xf32>
    %cst_3 = arith.constant 5.120000e+02 : f32
    %10 = vector.broadcast %cst_3 : f32 to vector<4x1xf32>
    %11 = arith.divf %9, %10 : vector<4x1xf32>
    %c0_4 = arith.constant 0 : index
    %c0_5 = arith.constant 0 : index
    %12 = vector.load %arg1[%c0_4, %c0_5] : memref<4x1xf32, #tpu.memory_space<vmem>>, vector<4x1xf32>
    %cst_6 = arith.constant 9.99999974E-6 : f32
    %13 = vector.broadcast %cst_6 : f32 to vector<4x1xf32>
    %14 = arith.addf %11, %13 : vector<4x1xf32>
    %15 = math.rsqrt %14 : vector<4x1xf32>
    %16 = arith.mulf %12, %15 : vector<4x1xf32>
    %17 = vector.broadcast %16 : vector<4x1xf32> to vector<4x512xf32>
    %18 = arith.mulf %6, %17 : vector<4x512xf32>
    %c0_7 = arith.constant 0 : index
    %c0_8 = arith.constant 0 : index
    %19 = vector.load %arg2[%c0_7, %c0_8] : memref<4x1xf32, #tpu.memory_space<vmem>>, vector<4x1xf32>
    %20 = vector.broadcast %19 : vector<4x1xf32> to vector<4x512xf32>
    %21 = arith.addf %18, %20 : vector<4x512xf32>
    %cst_9 = arith.constant 0.000000e+00 : f32
    %22 = vector.broadcast %cst_9 : f32 to vector<4x512xf32>
    %23 = arith.maximumf %21, %22 : vector<4x512xf32>
    %c0_10 = arith.constant 0 : index
    %c0_11 = arith.constant 0 : index
    %24 = vector.load %arg3[%c0_10, %c0_11] : memref<72x4xf32, #tpu.memory_space<vmem>>, vector<72x4xf32>
    %cst_12 = arith.constant dense<0.000000e+00> : vector<72x512xf32>
    %25 = tpu.matmul %24, %23, %cst_12 {dimension_numbers = #tpu.dot_dimension_numbers<[1], [0], [0], [1], [0, 0, 1, 1], [], []>} : vector<72x4xf32>, vector<4x512xf32>, vector<72x512xf32> -> vector<72x512xf32>
    %cst_13 = arith.constant dense<0.000000e+00> : vector<72xf32>
    %26 = vector.multi_reduction <add>, %25, %cst_13 [1] : vector<72x512xf32> to vector<72xf32>
    %27 = vector.shape_cast %26 : vector<72xf32> to vector<72x1xf32>
    %cst_14 = arith.constant 5.120000e+02 : f32
    %28 = vector.broadcast %cst_14 : f32 to vector<72x1xf32>
    %29 = arith.divf %27, %28 : vector<72x1xf32>
    %30 = vector.broadcast %29 : vector<72x1xf32> to vector<72x512xf32>
    %31 = arith.subf %25, %30 : vector<72x512xf32>
    %32 = arith.mulf %31, %31 : vector<72x512xf32>
    %cst_15 = arith.constant dense<0.000000e+00> : vector<72xf32>
    %33 = vector.multi_reduction <add>, %32, %cst_15 [1] : vector<72x512xf32> to vector<72xf32>
    %34 = vector.shape_cast %33 : vector<72xf32> to vector<72x1xf32>
    %cst_16 = arith.constant 5.120000e+02 : f32
    %35 = vector.broadcast %cst_16 : f32 to vector<72x1xf32>
    %36 = arith.divf %34, %35 : vector<72x1xf32>
    %c0_17 = arith.constant 0 : index
    %c0_18 = arith.constant 0 : index
    %37 = vector.load %arg4[%c0_17, %c0_18] : memref<72x1xf32, #tpu.memory_space<vmem>>, vector<72x1xf32>
    %cst_19 = arith.constant 9.99999974E-6 : f32
    %38 = vector.broadcast %cst_19 : f32 to vector<72x1xf32>
    %39 = arith.addf %36, %38 : vector<72x1xf32>
    %40 = math.rsqrt %39 : vector<72x1xf32>
    %41 = arith.mulf %37, %40 : vector<72x1xf32>
    %42 = vector.broadcast %41 : vector<72x1xf32> to vector<72x512xf32>
    %43 = arith.mulf %31, %42 : vector<72x512xf32>
    %c0_20 = arith.constant 0 : index
    %c0_21 = arith.constant 0 : index
    %44 = vector.load %arg5[%c0_20, %c0_21] : memref<72x1xf32, #tpu.memory_space<vmem>>, vector<72x1xf32>
    %45 = vector.broadcast %44 : vector<72x1xf32> to vector<72x512xf32>
    %46 = arith.addf %43, %45 : vector<72x512xf32>
    %c0_22 = arith.constant 0 : index
    %c0_23 = arith.constant 0 : index
    %47 = vector.load %arg6[%c0_22, %c0_23] : memref<24x72xf32, #tpu.memory_space<vmem>>, vector<24x72xf32>
    %cst_24 = arith.constant dense<0.000000e+00> : vector<24x512xf32>
    %48 = tpu.matmul %47, %46, %cst_24 {dimension_numbers = #tpu.dot_dimension_numbers<[1], [0], [0], [1], [0, 0, 1, 1], [], []>} : vector<24x72xf32>, vector<72x512xf32>, vector<24x512xf32> -> vector<24x512xf32>
    %cst_25 = arith.constant 0.000000e+00 : f32
    %49 = vector.broadcast %cst_25 : f32 to vector<24x512xf32>
    %50 = arith.maximumf %48, %49 : vector<24x512xf32>
    %c0_26 = arith.constant 0 : index
    %c0_27 = arith.constant 0 : index
    %51 = vector.load %arg7[%c0_26, %c0_27] : memref<24x512xf32, #tpu.memory_space<vmem>>, vector<24x512xf32>
    tpu.vector_store %arg7[%c0_26, %c0_27], %50 {strides = array<i32>} : memref<24x512xf32, #tpu.memory_space<vmem>>, vector<24x512xf32>,
    return
  }
}

</mosaic_0001>

<llo_original>
// kernel: tpu_custom_call.1
$region0: #{tpu_custom_call.1}
  #allocation0 [shape = 'u32[]', space=smem, size = 0x4, offset = 0x4, fixed_abs, tag = 'smem constant byte address 0x4 - core index']
  #allocation1 [shape = 'u32[144,128]{1,0:T(1,128)}', space=vmem, size = 0x12000, scoped, tag = 'internal scratch']
  %s0 = inlined_call_operand.vmem [shape: f32[4,512], index: 0, kind: input, shape index: {}]
  %s1 = inlined_call_operand.vmem [shape: f32[4,1], index: 1, kind: input, shape index: {}]
  %s2 = inlined_call_operand.vmem [shape: f32[4,1], index: 2, kind: input, shape index: {}]
  %s3 = inlined_call_operand.vmem [shape: f32[72,4], index: 3, kind: input, shape index: {}]
  %s4 = inlined_call_operand.vmem [shape: f32[72,1], index: 4, kind: input, shape index: {}]
  %s5 = inlined_call_operand.vmem [shape: f32[72,1], index: 5, kind: input, shape index: {}]
  %s6 = inlined_call_operand.vmem [shape: f32[24,72], index: 6, kind: input, shape index: {}]
  %s7 = inlined_call_operand.hbm [shape: f32[24,512], index: 7, kind: output, shape index: {}]
  %s8 = sld [smem:[#allocation0]]
  $region38: #{tpu_custom_call.1} parent=0
    _
  %s10 = ssub.s32 1, %s8
  %s11 = scalar_select 0, %s10, %s8
  $region1: #{tpu_custom_call.1} parent=0
    #allocation2 [shape = 'u8[49152]{0}', space=vmem, size = 0xc000, scoped, tag = 'output window, operand 0, single buffered']
    #allocation3 [shape = 's32[1]{0}', space=sflag, size = 0x4, scoped, tag = 'scoped memory for tpu_custom_call.1']
    %12 = vsyncpa [#allocation3], 0
    // Predicated region
    $region2: #{tpu_custom_call.1} parent=1 // pred_check
      _
    $region3: #{tpu_custom_call.1} parent=1 // pred_check_branch
      %14 = sbr.rel (0) target = $region5
    $region4: #{tpu_custom_call.1} parent=1 // pred_region
      _
    $region5: #{tpu_custom_call.1} parent=1 // pred_fallthru
      _
    // Predicated region
    $region6: #{tpu_custom_call.1} parent=1 // pred_check
      _
    $region7: #{tpu_custom_call.1} parent=1 // pred_check_branch
      %16 = sbr.rel (0) target = $region9
    $region8: #{tpu_custom_call.1} parent=1 // pred_region
      _
    $region9: #{tpu_custom_call.1} parent=1 // pred_fallthru
      _
    // Predicated region
    $region10: #{tpu_custom_call.1} parent=1 // pred_check
      _
    $region11: #{tpu_custom_call.1} parent=1 // pred_check_branch
      %18 = sbr.rel (0) target = $region13
    $region12: #{tpu_custom_call.1} parent=1 // pred_region
      _
    $region13: #{tpu_custom_call.1} parent=1 // pred_fallthru
      _
    // Predicated region
    $region14: #{tpu_custom_call.1} parent=1 // pred_check
      _
    $region15: #{tpu_custom_call.1} parent=1 // pred_check_branch
      %20 = sbr.rel (0) target = $region17
    $region16: #{tpu_custom_call.1} parent=1 // pred_region
      _
    $region17: #{tpu_custom_call.1} parent=1 // pred_fallthru
      _
    // Predicated region
    $region18: #{tpu_custom_call.1} parent=1 // pred_check
      _
    $region19: #{tpu_custom_call.1} parent=1 // pred_check_branch
      %22 = sbr.rel (0) target = $region21
    $region20: #{tpu_custom_call.1} parent=1 // pred_region
      _
    $region21: #{tpu_custom_call.1} parent=1 // pred_fallthru
      _
    // Predicated region
    $region22: #{tpu_custom_call.1} parent=1 // pred_check
      _
    $region23: #{tpu_custom_call.1} parent=1 // pred_check_branch
      %24 = sbr.rel (0) target = $region25
    $region24: #{tpu_custom_call.1} parent=1 // pred_region
      _
    $region25: #{tpu_custom_call.1} parent=1 // pred_fallthru
      _
    // Predicated region
    $region26: #{tpu_custom_call.1} parent=1 // pred_check
      _
    $region27: #{tpu_custom_call.1} parent=1 // pred_check_branch
      %26 = sbr.rel (0) target = $region29
    $region28: #{tpu_custom_call.1} parent=1 // pred_region
      _
    $region29: #{tpu_custom_call.1} parent=1 // pred_fallthru
      _
    %v27 = vld [vmem:[%s0] sm:$0xff]
    %v28 = vld [vmem:[%s0 + $0x8] sm:$0xff]
    %v31 = vcombine.high %v27, %v27
    %v32 = vcombine.high %v28, %v28
    %vm35 = vcmask 1043456
    %v36 = vsel %vm35, %v27, 0.0
    %v37 = vsel %vm35, %v31, 0.0
    %v38 = vadd.f32 %v36, %v37
    %v39 = vsel %vm35, %v28, 0.0
    %v40 = vadd.f32 %v38, %v39
    %v41 = vsel %vm35, %v32, 0.0
    %v42 = vadd.f32 %v40, %v41
    %43 = vadd.xlane.f32.xlu0 %v42
    %v44 = vpop.xlane.xlu0 %43
    %v45 = vrcp.pop 512.0
    %v46 = vmul.f32 %v44, %v45
    %v49 = vunpack.c.l.s4 839922192
    %v50 = vunpack.c.0.s8 %v49
    %v51 = vlaneseq
    %v52 = vshrl.u32 %v51, 7
    %v53 = vsub.s32 %v50, %v52
    %v54 = vrot.slane %v46, %v53
    %v56 = vsub.f32 %v27, %v54
    %v57 = vsub.f32 %v28, %v54
    %v58 = vmul.f32 %v56, %v56
    %v59 = vmul.f32 %v57, %v57
    %v62 = vcombine.high %v58, %v58
    %v63 = vcombine.high %v59, %v59
    %v66 = vsel %vm35, %v58, 0.0
    %v67 = vsel %vm35, %v62, 0.0
    %v68 = vadd.f32 %v66, %v67
    %v69 = vsel %vm35, %v59, 0.0
    %v70 = vadd.f32 %v68, %v69
    %v71 = vsel %vm35, %v63, 0.0
    %v72 = vadd.f32 %v70, %v71
    %73 = vadd.xlane.f32.xlu0 %v72
    %v74 = vpop.xlane.xlu0 %73
    %v75 = vmul.f32 %v74, %v45
    %v76 = vld [vmem:[%s1] sm:$0xf]
    %v77 = vadd.f32 %v75, 1e-05
    %v78 = vrsqrt.pop %v77
    %v79 = vmul.f32 %v76, %v78
    %81 = vset.pattern.permute.xlu0 0
    %82 = vperm.xlu0 %81, %v79
    %v83 = vpop.permute.xlu0 %82
    %v85 = vunpack.c.l.s4 839922192
    %v86 = vunpack.c.0.s8 %v85
    %v87 = vlaneseq
    %v88 = vshrl.u32 %v87, 7
    %v89 = vsub.s32 %v86, %v88
    %v90 = vrot.slane %v83, %v89
    %v92 = vmul.f32 %v56, %v90
    %v93 = vmul.f32 %v57, %v90
    %v94 = vld [vmem:[%s2] sm:$0xf]
    %96 = vset.pattern.permute.xlu0 0
    %97 = vperm.xlu0 %96, %v94
    %v98 = vpop.permute.xlu0 %97
    %v100 = vunpack.c.l.s4 839922192
    %v101 = vunpack.c.0.s8 %v100
    %v102 = vlaneseq
    %v103 = vshrl.u32 %v102, 7
    %v104 = vsub.s32 %v101, %v103
    %v105 = vrot.slane %v98, %v104
    %v107 = vadd.f32 %v92, %v105
    %v108 = vadd.f32 %v93, %v105
    %v109 = vmax.f32 %v107, 0.0
    %v110 = vmax.f32 %v108, 0.0
    %v111 = vld [vmem:[%s3] sm:$0xff]
    %v112 = vld [vmem:[%s3 + $0x8] sm:$0xff]
    %v113 = vld [vmem:[%s3 + $0x10] sm:$0xff]
    %v114 = vld [vmem:[%s3 + $0x18] sm:$0xff]
    %v115 = vld [vmem:[%s3 + $0x20] sm:$0xff]
    %v116 = vld [vmem:[%s3 + $0x28] sm:$0xff]
    %v117 = vld [vmem:[%s3 + $0x30] sm:$0xff]
    %v118 = vld [vmem:[%s3 + $0x38] sm:$0xff]
    %v119 = vld [vmem:[%s3 + $0x40] sm:$0xff]
    %v122 = vcombine.high %v109, %v109
    %v123 = vcombine.high %v110, %v110
    %vm124 = vcmask 31744
    %v126 = vsel %vm124, %v111, 0
    %v129 = vsel %vm124, %v112, 0
    %v132 = vsel %vm124, %v113, 0
    %v135 = vsel %vm124, %v114, 0
    %v138 = vsel %vm124, %v115, 0
    %v141 = vsel %vm124, %v116, 0
    %v144 = vsel %vm124, %v117, 0
    %v147 = vsel %vm124, %v118, 0
    %v150 = vsel %vm124, %v119, 0
    %v152 = vsel %vm35, %v109, 0
    %v154 = vsel %vm35, %v122, 0
    %v156 = vsel %vm35, %v110, 0
    %v158 = vsel %vm35, %v123, 0
    %160 = vmatprep.subr.mxu0 0.0
    %161 = vmatpush1.msra.mxu0 0.0
    %162 = vmatprep.subr.mxu0 0.0
    %163 = vmatpush1.msra.mxu0 0.0
    %164 = vmatprep.subr.mxu0 0.0
    %165 = vmatpush1.msra.mxu0 0.0
    %166 = vmatprep.subr.mxu0 0.0
    %167 = vmatpush1.msra.mxu0 0.0
    %168 = vmatprep.subr.mxu0 0.0
    %169 = vmatpush1.msra.mxu0 0.0
    %170 = vmatprep.subr.mxu0 0.0
    %171 = vmatpush1.msra.mxu0 0.0
    %172 = vmatprep.subr.mxu0 0.0
    %173 = vmatpush1.msra.mxu0 0.0
    %174 = vmatprep.subr.mxu0 0.0
    %175 = vmatpush1.msra.mxu0 0.0
    %176 = vmatprep.subr.mxu0 0.0
    %177 = vmatpush1.msra.mxu0 0.0
    %178 = vmatprep.subr.mxu0 0.0
    %179 = vmatpush1.msra.mxu0 0.0
    %180 = vmatprep.subr.mxu0 0.0
    %181 = vmatpush1.msra.mxu0 0.0
    %182 = vmatprep.subr.mxu0 0.0
    %183 = vmatpush1.msra.mxu0 0.0
    %184 = vmatprep.subr.mxu0 0.0
    %185 = vmatpush1.msra.mxu0 0.0
    %186 = vmatprep.subr.mxu0 0.0
    %187 = vmatpush1.msra.mxu0 0.0
    %188 = vmatprep.subr.mxu0 0.0
    %189 = vmatpush1.msra.mxu0 0.0
    %190 = vmatprep.subr.mxu0 %v154
    %191 = vmatpush1.msra.mxu0 %v152
    %192 = vmatprep.subr.mxu0 0.0
    %193 = vmatpush2.msra.mxu0 0.0
    %194 = vmatprep.subr.mxu0 0.0
    %195 = vmatpush2.msra.mxu0 0.0
    %196 = vmatprep.subr.mxu0 0.0
    %197 = vmatpush2.msra.mxu0 0.0
    %198 = vmatprep.subr.mxu0 0.0
    %199 = vmatpush2.msra.mxu0 0.0
    %200 = vmatprep.subr.mxu0 0.0
    %201 = vmatpush2.msra.mxu0 0.0
    %202 = vmatprep.subr.mxu0 0.0
    %203 = vmatpush2.msra.mxu0 0.0
    %204 = vmatprep.subr.mxu0 0.0
    %205 = vmatpush2.msra.mxu0 0.0
    %206 = vmatprep.subr.mxu0 0.0
    %207 = vmatpush2.msra.mxu0 0.0
    %208 = vmatprep.subr.mxu0 0.0
    %209 = vmatpush2.msra.mxu0 0.0
    %210 = vmatprep.subr.mxu0 0.0
    %211 = vmatpush2.msra.mxu0 0.0
    %212 = vmatprep.subr.mxu0 0.0
    %213 = vmatpush2.msra.mxu0 0.0
    %214 = vmatprep.subr.mxu0 0.0
    %215 = vmatpush2.msra.mxu0 0.0
    %216 = vmatprep.subr.mxu0 0.0
    %217 = vmatpush2.msra.mxu0 0.0
    %218 = vmatprep.subr.mxu0 0.0
    %219 = vmatpush2.msra.mxu0 0.0
    %220 = vmatprep.subr.mxu0 0.0
    %221 = vmatpush2.msra.mxu0 0.0
    %222 = vmatprep.subr.mxu0 0.0
    %223 = vmatpush2.msra.mxu0 0.0
    %224 = vmatprep.mubr.f32.mxu0 0.0
    %225 = vmatmul.mubr.f32.gmra.mxu0 %v126
    %v226 = vpop.f32.mrf.mxu0
    %v227 = vadd.f32 0.0, %v226
    %v228 = vpop.f32.mrf.mxu0
    %v229 = vadd.f32 0.0, %v228
    %230 = vmatprep.mubr.f32.mxu0 0.0
    %231 = vmatmul.mubr.f32.gmra.mxu0 %v129
    %v232 = vpop.f32.mrf.mxu0
    %v233 = vadd.f32 0.0, %v232
    %v234 = vpop.f32.mrf.mxu0
    %v235 = vadd.f32 0.0, %v234
    %236 = vmatprep.mubr.f32.mxu0 0.0
    %237 = vmatmul.mubr.f32.gmra.mxu0 %v132
    %v238 = vpop.f32.mrf.mxu0
    %v239 = vadd.f32 0.0, %v238
    %v240 = vpop.f32.mrf.mxu0
    %v241 = vadd.f32 0.0, %v240
    %242 = vmatprep.mubr.f32.mxu0 0.0
    %243 = vmatmul.mubr.f32.gmra.mxu0 %v135
    %v244 = vpop.f32.mrf.mxu0
    %v245 = vadd.f32 0.0, %v244
    %v246 = vpop.f32.mrf.mxu0
    %v247 = vadd.f32 0.0, %v246
    %248 = vmatprep.mubr.f32.mxu0 0.0
    %249 = vmatmul.mubr.f32.gmra.mxu0 %v138
    %v250 = vpop.f32.mrf.mxu0
    %v251 = vadd.f32 0.0, %v250
    %v252 = vpop.f32.mrf.mxu0
    %v253 = vadd.f32 0.0, %v252
    %254 = vmatprep.mubr.f32.mxu0 0.0
    %255 = vmatmul.mubr.f32.gmra.mxu0 %v141
    %v256 = vpop.f32.mrf.mxu0
    %v257 = vadd.f32 0.0, %v256
    %v258 = vpop.f32.mrf.mxu0
    %v259 = vadd.f32 0.0, %v258
    %260 = vmatprep.mubr.f32.mxu0 0.0
    %261 = vmatmul.mubr.f32.gmra.mxu0 %v144
    %v262 = vpop.f32.mrf.mxu0
    %v263 = vadd.f32 0.0, %v262
    %v264 = vpop.f32.mrf.mxu0
    %v265 = vadd.f32 0.0, %v264
    %266 = vmatprep.mubr.f32.mxu0 0.0
    %267 = vmatmul.mubr.f32.gmra.mxu0 %v147
    %v268 = vpop.f32.mrf.mxu0
    %v269 = vadd.f32 0.0, %v268
    %v270 = vpop.f32.mrf.mxu0
    %v271 = vadd.f32 0.0, %v270
    %272 = vmatprep.mubr.f32.mxu0 0.0
    %273 = vmatmul.mubr.f32.gmra.mxu0 %v150
    %v274 = vpop.f32.mrf.mxu0
    %v275 = vadd.f32 0.0, %v274
    %v276 = vpop.f32.mrf.mxu0
    %v277 = vadd.f32 0.0, %v276
    %278 = vdwg.mxu0
    %279 = vmatprep.subr.mxu0 0.0
    %280 = vmatpush1.msra.mxu0 0.0
    %281 = vmatprep.subr.mxu0 0.0
    %282 = vmatpush1.msra.mxu0 0.0
    %283 = vmatprep.subr.mxu0 0.0
    %284 = vmatpush1.msra.mxu0 0.0
    %285 = vmatprep.subr.mxu0 0.0
    %286 = vmatpush1.msra.mxu0 0.0
    %287 = vmatprep.subr.mxu0 0.0
    %288 = vmatpush1.msra.mxu0 0.0
    %289 = vmatprep.subr.mxu0 0.0
    %290 = vmatpush1.msra.mxu0 0.0
    %291 = vmatprep.subr.mxu0 0.0
    %292 = vmatpush1.msra.mxu0 0.0
    %293 = vmatprep.subr.mxu0 0.0
    %294 = vmatpush1.msra.mxu0 0.0
    %295 = vmatprep.subr.mxu0 0.0
    %296 = vmatpush1.msra.mxu0 0.0
    %297 = vmatprep.subr.mxu0 0.0
    %298 = vmatpush1.msra.mxu0 0.0
    %299 = vmatprep.subr.mxu0 0.0
    %300 = vmatpush1.msra.mxu0 0.0
    %301 = vmatprep.subr.mxu0 0.0
    %302 = vmatpush1.msra.mxu0 0.0
    %303 = vmatprep.subr.mxu0 0.0
    %304 = vmatpush1.msra.mxu0 0.0
    %305 = vmatprep.subr.mxu0 0.0
    %306 = vmatpush1.msra.mxu0 0.0
    %307 = vmatprep.subr.mxu0 0.0
    %308 = vmatpush1.msra.mxu0 0.0
    %309 = vmatprep.subr.mxu0 %v158
    %310 = vmatpush1.msra.mxu0 %v156
    %311 = vmatprep.subr.mxu0 0.0
    %312 = vmatpush2.msra.mxu0 0.0
    %313 = vmatprep.subr.mxu0 0.0
    %314 = vmatpush2.msra.mxu0 0.0
    %315 = vmatprep.subr.mxu0 0.0
    %316 = vmatpush2.msra.mxu0 0.0
    %317 = vmatprep.subr.mxu0 0.0
    %318 = vmatpush2.msra.mxu0 0.0
    %319 = vmatprep.subr.mxu0 0.0
    %320 = vmatpush2.msra.mxu0 0.0
    %321 = vmatprep.subr.mxu0 0.0
    %322 = vmatpush2.msra.mxu0 0.0
    %323 = vmatprep.subr.mxu0 0.0
    %324 = vmatpush2.msra.mxu0 0.0
    %325 = vmatprep.subr.mxu0 0.0
    %326 = vmatpush2.msra.mxu0 0.0
    %327 = vmatprep.subr.mxu0 0.0
    %328 = vmatpush2.msra.mxu0 0.0
    %329 = vmatprep.subr.mxu0 0.0
    %330 = vmatpush2.msra.mxu0 0.0
    %331 = vmatprep.subr.mxu0 0.0
    %332 = vmatpush2.msra.mxu0 0.0
    %333 = vmatprep.subr.mxu0 0.0
    %334 = vmatpush2.msra.mxu0 0.0
    %335 = vmatprep.subr.mxu0 0.0
    %336 = vmatpush2.msra.mxu0 0.0
    %337 = vmatprep.subr.mxu0 0.0
    %338 = vmatpush2.msra.mxu0 0.0
    %339 = vmatprep.subr.mxu0 0.0
    %340 = vmatpush2.msra.mxu0 0.0
    %341 = vmatprep.subr.mxu0 0.0
    %342 = vmatpush2.msra.mxu0 0.0
    %343 = vmatprep.mubr.f32.mxu0 0.0
    %344 = vmatmul.mubr.f32.gmra.mxu0 %v126
    %v345 = vpop.f32.mrf.mxu0
    %v346 = vadd.f32 0.0, %v345
    %v347 = vpop.f32.mrf.mxu0
    %v348 = vadd.f32 0.0, %v347
    %349 = vmatprep.mubr.f32.mxu0 0.0
    %350 = vmatmul.mubr.f32.gmra.mxu0 %v129
    %v351 = vpop.f32.mrf.mxu0
    %v352 = vadd.f32 0.0, %v351
    %v353 = vpop.f32.mrf.mxu0
    %v354 = vadd.f32 0.0, %v353
    %355 = vmatprep.mubr.f32.mxu0 0.0
    %356 = vmatmul.mubr.f32.gmra.mxu0 %v132
    %v357 = vpop.f32.mrf.mxu0
    %v358 = vadd.f32 0.0, %v357
    %v359 = vpop.f32.mrf.mxu0
    %v360 = vadd.f32 0.0, %v359
    %361 = vmatprep.mubr.f32.mxu0 0.0
    %362 = vmatmul.mubr.f32.gmra.mxu0 %v135
    %v363 = vpop.f32.mrf.mxu0
    %v364 = vadd.f32 0.0, %v363
    %v365 = vpop.f32.mrf.mxu0
    %v366 = vadd.f32 0.0, %v365
    %367 = vmatprep.mubr.f32.mxu0 0.0
    %368 = vmatmul.mubr.f32.gmra.mxu0 %v138
    %v369 = vpop.f32.mrf.mxu0
    %v370 = vadd.f32 0.0, %v369
    %v371 = vpop.f32.mrf.mxu0
    %v372 = vadd.f32 0.0, %v371
    %373 = vmatprep.mubr.f32.mxu0 0.0
    %374 = vmatmul.mubr.f32.gmra.mxu0 %v141
    %v375 = vpop.f32.mrf.mxu0
    %v376 = vadd.f32 0.0, %v375
    %v377 = vpop.f32.mrf.mxu0
    %v378 = vadd.f32 0.0, %v377
    %379 = vmatprep.mubr.f32.mxu0 0.0
    %380 = vmatmul.mubr.f32.gmra.mxu0 %v144
    %v381 = vpop.f32.mrf.mxu0
    %v382 = vadd.f32 0.0, %v381
    %v383 = vpop.f32.mrf.mxu0
    %v384 = vadd.f32 0.0, %v383
    %385 = vmatprep.mubr.f32.mxu0 0.0
    %386 = vmatmul.mubr.f32.gmra.mxu0 %v147
    %v387 = vpop.f32.mrf.mxu0
    %v388 = vadd.f32 0.0, %v387
    %v389 = vpop.f32.mrf.mxu0
    %v390 = vadd.f32 0.0, %v389
    %391 = vmatprep.mubr.f32.mxu0 0.0
    %392 = vmatmul.mubr.f32.gmra.mxu0 %v150
    %v393 = vpop.f32.mrf.mxu0
    %v394 = vadd.f32 0.0, %v393
    %v395 = vpop.f32.mrf.mxu0
    %v396 = vadd.f32 0.0, %v395
    %397 = vdwg.mxu0
    %v398 = vadd.f32 %v227, %v229
    %v399 = vadd.f32 %v398, %v346
    %v400 = vadd.f32 %v399, %v348
    %401 = vadd.xlane.f32.xlu0 %v400
    %v402 = vpop.xlane.xlu0 %401
    %v403 = vadd.f32 %v233, %v235
    %v404 = vadd.f32 %v403, %v352
    %v405 = vadd.f32 %v404, %v354
    %406 = vadd.xlane.f32.xlu0 %v405
    %v407 = vpop.xlane.xlu0 %406
    %v408 = vadd.f32 %v239, %v241
    %v409 = vadd.f32 %v408, %v358
    %v410 = vadd.f32 %v409, %v360
    %411 = vadd.xlane.f32.xlu0 %v410
    %v412 = vpop.xlane.xlu0 %411
    %v413 = vadd.f32 %v245, %v247
    %v414 = vadd.f32 %v413, %v364
    %v415 = vadd.f32 %v414, %v366
    %416 = vadd.xlane.f32.xlu0 %v415
    %v417 = vpop.xlane.xlu0 %416
    %v418 = vadd.f32 %v251, %v253
    %v419 = vadd.f32 %v418, %v370
    %v420 = vadd.f32 %v419, %v372
    %421 = vadd.xlane.f32.xlu0 %v420
    %v422 = vpop.xlane.xlu0 %421
    %v423 = vadd.f32 %v257, %v259
    %v424 = vadd.f32 %v423, %v376
    %v425 = vadd.f32 %v424, %v378
    %426 = vadd.xlane.f32.xlu0 %v425
    %v427 = vpop.xlane.xlu0 %426
    %v428 = vadd.f32 %v263, %v265
    %v429 = vadd.f32 %v428, %v382
    %v430 = vadd.f32 %v429, %v384
    %431 = vadd.xlane.f32.xlu0 %v430
    %v432 = vpop.xlane.xlu0 %431
    %v433 = vadd.f32 %v269, %v271
    %v434 = vadd.f32 %v433, %v388
    %v435 = vadd.f32 %v434, %v390
    %436 = vadd.xlane.f32.xlu0 %v435
    %v437 = vpop.xlane.xlu0 %436
    %v438 = vadd.f32 %v275, %v277
    %v439 = vadd.f32 %v438, %v394
    %v440 = vadd.f32 %v439, %v396
    %441 = vadd.xlane.f32.xlu0 %v440
    %v442 = vpop.xlane.xlu0 %441
    %v443 = vmul.f32 %v402, %v45
    %v444 = vmul.f32 %v407, %v45
    %v445 = vmul.f32 %v412, %v45
    %v446 = vmul.f32 %v417, %v45
    %v447 = vmul.f32 %v422, %v45
    %v448 = vmul.f32 %v427, %v45
    %v449 = vmul.f32 %v432, %v45
    %v450 = vmul.f32 %v437, %v45
    %v451 = vmul.f32 %v442, %v45
    %v452 = vsub.f32 %v227, %v443
    %v453 = vsub.f32 %v229, %v443
    %v454 = vsub.f32 %v346, %v443
    %v455 = vsub.f32 %v348, %v443
    %v456 = vsub.f32 %v233, %v444
    %v457 = vsub.f32 %v235, %v444
    %v458 = vsub.f32 %v352, %v444
    %v459 = vsub.f32 %v354, %v444
    %v460 = vsub.f32 %v239, %v445
    %v461 = vsub.f32 %v241, %v445
    %v462 = vsub.f32 %v358, %v445
    %v463 = vsub.f32 %v360, %v445
    %v464 = vsub.f32 %v245, %v446
    %v465 = vsub.f32 %v247, %v446
    %v466 = vsub.f32 %v364, %v446
    %v467 = vsub.f32 %v366, %v446
    %v468 = vsub.f32 %v251, %v447
    %v469 = vsub.f32 %v253, %v447
    %v470 = vsub.f32 %v370, %v447
    %v471 = vsub.f32 %v372, %v447
    %v472 = vsub.f32 %v257, %v448
    %v473 = vsub.f32 %v259, %v448
    %v474 = vsub.f32 %v376, %v448
    %v475 = vsub.f32 %v378, %v448
    %v476 = vsub.f32 %v263, %v449
    %v477 = vsub.f32 %v265, %v449
    %v478 = vsub.f32 %v382, %v449
    %v479 = vsub.f32 %v384, %v449
    %v480 = vsub.f32 %v269, %v450
    %v481 = vsub.f32 %v271, %v450
    %v482 = vsub.f32 %v388, %v450
    %v483 = vsub.f32 %v390, %v450
    %v484 = vsub.f32 %v275, %v451
    %v485 = vsub.f32 %v277, %v451
    %v486 = vsub.f32 %v394, %v451
    %v487 = vsub.f32 %v396, %v451
    %v488 = vmul.f32 %v452, %v452
    %v489 = vmul.f32 %v453, %v453
    %v490 = vmul.f32 %v454, %v454
    %v491 = vmul.f32 %v455, %v455
    %v492 = vmul.f32 %v456, %v456
    %v493 = vmul.f32 %v457, %v457
    %v494 = vmul.f32 %v458, %v458
    %v495 = vmul.f32 %v459, %v459
    %v496 = vmul.f32 %v460, %v460
    %v497 = vmul.f32 %v461, %v461
    %v498 = vmul.f32 %v462, %v462
    %v499 = vmul.f32 %v463, %v463
    %v500 = vmul.f32 %v464, %v464
    %v501 = vmul.f32 %v465, %v465
    %v502 = vmul.f32 %v466, %v466
    %v503 = vmul.f32 %v467, %v467
    %v504 = vmul.f32 %v468, %v468
    %v505 = vmul.f32 %v469, %v469
    %v506 = vmul.f32 %v470, %v470
    %v507 = vmul.f32 %v471, %v471
    %v508 = vmul.f32 %v472, %v472
    %v509 = vmul.f32 %v473, %v473
    %v510 = vmul.f32 %v474, %v474
    %v511 = vmul.f32 %v475, %v475
    %v512 = vmul.f32 %v476, %v476
    %v513 = vmul.f32 %v477, %v477
    %v514 = vmul.f32 %v478, %v478
    %v515 = vmul.f32 %v479, %v479
    %v516 = vmul.f32 %v480, %v480
    %v517 = vmul.f32 %v481, %v481
    %v518 = vmul.f32 %v482, %v482
    %v519 = vmul.f32 %v483, %v483
    %v520 = vmul.f32 %v484, %v484
    %v521 = vmul.f32 %v485, %v485
    %v522 = vmul.f32 %v486, %v486
    %v523 = vmul.f32 %v487, %v487
    %v524 = vadd.f32 %v488, %v489
    %v525 = vadd.f32 %v524, %v490
    %v526 = vadd.f32 %v525, %v491
    %527 = vadd.xlane.f32.xlu0 %v526
    %v528 = vpop.xlane.xlu0 %527
    %v529 = vadd.f32 %v492, %v493
    %v530 = vadd.f32 %v529, %v494
    %v531 = vadd.f32 %v530, %v495
    %532 = vadd.xlane.f32.xlu0 %v531
    %v533 = vpop.xlane.xlu0 %532
    %v534 = vadd.f32 %v496, %v497
    %v535 = vadd.f32 %v534, %v498
    %v536 = vadd.f32 %v535, %v499
    %537 = vadd.xlane.f32.xlu0 %v536
    %v538 = vpop.xlane.xlu0 %537
    %v539 = vadd.f32 %v500, %v501
    %v540 = vadd.f32 %v539, %v502
    %v541 = vadd.f32 %v540, %v503
    %542 = vadd.xlane.f32.xlu0 %v541
    %v543 = vpop.xlane.xlu0 %542
    %v544 = vadd.f32 %v504, %v505
    %v545 = vadd.f32 %v544, %v506
    %v546 = vadd.f32 %v545, %v507
    %547 = vadd.xlane.f32.xlu0 %v546
    %v548 = vpop.xlane.xlu0 %547
    %v549 = vadd.f32 %v508, %v509
    %v550 = vadd.f32 %v549, %v510
    %v551 = vadd.f32 %v550, %v511
    %552 = vadd.xlane.f32.xlu0 %v551
    %v553 = vpop.xlane.xlu0 %552
    %v554 = vadd.f32 %v512, %v513
    %v555 = vadd.f32 %v554, %v514
    %v556 = vadd.f32 %v555, %v515
    %557 = vadd.xlane.f32.xlu0 %v556
    %v558 = vpop.xlane.xlu0 %557
    %v559 = vadd.f32 %v516, %v517
    %v560 = vadd.f32 %v559, %v518
    %v561 = vadd.f32 %v560, %v519
    %562 = vadd.xlane.f32.xlu0 %v561
    %v563 = vpop.xlane.xlu0 %562
    %v564 = vadd.f32 %v520, %v521
    %v565 = vadd.f32 %v564, %v522
    %v566 = vadd.f32 %v565, %v523
    %567 = vadd.xlane.f32.xlu0 %v566
    %v568 = vpop.xlane.xlu0 %567
    %v569 = vmul.f32 %v528, %v45
    %v570 = vmul.f32 %v533, %v45
    %v571 = vmul.f32 %v538, %v45
    %v572 = vmul.f32 %v543, %v45
    %v573 = vmul.f32 %v548, %v45
    %v574 = vmul.f32 %v553, %v45
    %v575 = vmul.f32 %v558, %v45
    %v576 = vmul.f32 %v563, %v45
    %v577 = vmul.f32 %v568, %v45
    %v578 = vld [vmem:[%s4] sm:$0xff]
    %v579 = vld [vmem:[%s4 + $0x8] sm:$0xff]
    %v580 = vld [vmem:[%s4 + $0x10] sm:$0xff]
    %v581 = vld [vmem:[%s4 + $0x18] sm:$0xff]
    %v582 = vld [vmem:[%s4 + $0x20] sm:$0xff]
    %v583 = vld [vmem:[%s4 + $0x28] sm:$0xff]
    %v584 = vld [vmem:[%s4 + $0x30] sm:$0xff]
    %v585 = vld [vmem:[%s4 + $0x38] sm:$0xff]
    %v586 = vld [vmem:[%s4 + $0x40] sm:$0xff]
    %v587 = vadd.f32 %v569, 1e-05
    %v588 = vadd.f32 %v570, 1e-05
    %v589 = vadd.f32 %v571, 1e-05
    %v590 = vadd.f32 %v572, 1e-05
    %v591 = vadd.f32 %v573, 1e-05
    %v592 = vadd.f32 %v574, 1e-05
    %v593 = vadd.f32 %v575, 1e-05
    %v594 = vadd.f32 %v576, 1e-05
    %v595 = vadd.f32 %v577, 1e-05
    %v596 = vrsqrt.pop %v587
    %v597 = vrsqrt.pop %v588
    %v598 = vrsqrt.pop %v589
    %v599 = vrsqrt.pop %v590
    %v600 = vrsqrt.pop %v591
    %v601 = vrsqrt.pop %v592
    %v602 = vrsqrt.pop %v593
    %v603 = vrsqrt.pop %v594
    %v604 = vrsqrt.pop %v595
    %v605 = vmul.f32 %v578, %v596
    %v606 = vmul.f32 %v579, %v597
    %v607 = vmul.f32 %v580, %v598
    %v608 = vmul.f32 %v581, %v599
    %v609 = vmul.f32 %v582, %v600
    %v610 = vmul.f32 %v583, %v601
    %v611 = vmul.f32 %v584, %v602
    %v612 = vmul.f32 %v585, %v603
    %v613 = vmul.f32 %v586, %v604
    %615 = vset.pattern.permute.xlu0 0
    %616 = vperm.xlu0 %615, %v605
    %v617 = vpop.permute.xlu0 %616
    %620 = vset.pattern.permute.xlu0 0
    %621 = vperm.xlu0 %620, %v606
    %v622 = vpop.permute.xlu0 %621
    %625 = vset.pattern.permute.xlu0 0
    %626 = vperm.xlu0 %625, %v607
    %v627 = vpop.permute.xlu0 %626
    %630 = vset.pattern.permute.xlu0 0
    %631 = vperm.xlu0 %630, %v608
    %v632 = vpop.permute.xlu0 %631
    %635 = vset.pattern.permute.xlu0 0
    %636 = vperm.xlu0 %635, %v609
    %v637 = vpop.permute.xlu0 %636
    %640 = vset.pattern.permute.xlu0 0
    %641 = vperm.xlu0 %640, %v610
    %v642 = vpop.permute.xlu0 %641
    %645 = vset.pattern.permute.xlu0 0
    %646 = vperm.xlu0 %645, %v611
    %v647 = vpop.permute.xlu0 %646
    %650 = vset.pattern.permute.xlu0 0
    %651 = vperm.xlu0 %650, %v612
    %v652 = vpop.permute.xlu0 %651
    %655 = vset.pattern.permute.xlu0 0
    %656 = vperm.xlu0 %655, %v613
    %v657 = vpop.permute.xlu0 %656
    %v659 = vmul.f32 %v452, %v617
    %v660 = vmul.f32 %v453, %v617
    %v661 = vmul.f32 %v454, %v617
    %v662 = vmul.f32 %v455, %v617
    %v663 = vmul.f32 %v456, %v622
    %v664 = vmul.f32 %v457, %v622
    %v665 = vmul.f32 %v458, %v622
    %v666 = vmul.f32 %v459, %v622
    %v667 = vmul.f32 %v460, %v627
    %v668 = vmul.f32 %v461, %v627
    %v669 = vmul.f32 %v462, %v627
    %v670 = vmul.f32 %v463, %v627
    %v671 = vmul.f32 %v464, %v632
    %v672 = vmul.f32 %v465, %v632
    %v673 = vmul.f32 %v466, %v632
    %v674 = vmul.f32 %v467, %v632
    %v675 = vmul.f32 %v468, %v637
    %v676 = vmul.f32 %v469, %v637
    %v677 = vmul.f32 %v470, %v637
    %v678 = vmul.f32 %v471, %v637
    %v679 = vmul.f32 %v472, %v642
    %v680 = vmul.f32 %v473, %v642
    %v681 = vmul.f32 %v474, %v642
    %v682 = vmul.f32 %v475, %v642
    %v683 = vmul.f32 %v476, %v647
    %v684 = vmul.f32 %v477, %v647
    %v685 = vmul.f32 %v478, %v647
    %v686 = vmul.f32 %v479, %v647
    %v687 = vmul.f32 %v480, %v652
    %v688 = vmul.f32 %v481, %v652
    %v689 = vmul.f32 %v482, %v652
    %v690 = vmul.f32 %v483, %v652
    %v691 = vmul.f32 %v484, %v657
    %v692 = vmul.f32 %v485, %v657
    %v693 = vmul.f32 %v486, %v657
    %v694 = vmul.f32 %v487, %v657
    %v695 = vld [vmem:[%s5] sm:$0xff]
    %v696 = vld [vmem:[%s5 + $0x8] sm:$0xff]
    %v697 = vld [vmem:[%s5 + $0x10] sm:$0xff]
    %v698 = vld [vmem:[%s5 + $0x18] sm:$0xff]
    %v699 = vld [vmem:[%s5 + $0x20] sm:$0xff]
    %v700 = vld [vmem:[%s5 + $0x28] sm:$0xff]
    %v701 = vld [vmem:[%s5 + $0x30] sm:$0xff]
    %v702 = vld [vmem:[%s5 + $0x38] sm:$0xff]
    %v703 = vld [vmem:[%s5 + $0x40] sm:$0xff]
    %705 = vset.pattern.permute.xlu0 0
    %706 = vperm.xlu0 %705, %v695
    %v707 = vpop.permute.xlu0 %706
    %710 = vset.pattern.permute.xlu0 0
    %711 = vperm.xlu0 %710, %v696
    %v712 = vpop.permute.xlu0 %711
    %715 = vset.pattern.permute.xlu0 0
    %716 = vperm.xlu0 %715, %v697
    %v717 = vpop.permute.xlu0 %716
    %720 = vset.pattern.permute.xlu0 0
    %721 = vperm.xlu0 %720, %v698
    %v722 = vpop.permute.xlu0 %721
    %725 = vset.pattern.permute.xlu0 0
    %726 = vperm.xlu0 %725, %v699
    %v727 = vpop.permute.xlu0 %726
    %730 = vset.pattern.permute.xlu0 0
    %731 = vperm.xlu0 %730, %v700
    %v732 = vpop.permute.xlu0 %731
    %735 = vset.pattern.permute.xlu0 0
    %736 = vperm.xlu0 %735, %v701
    %v737 = vpop.permute.xlu0 %736
    %740 = vset.pattern.permute.xlu0 0
    %741 = vperm.xlu0 %740, %v702
    %v742 = vpop.permute.xlu0 %741
    %745 = vset.pattern.permute.xlu0 0
    %746 = vperm.xlu0 %745, %v703
    %v747 = vpop.permute.xlu0 %746
    %v749 = vadd.f32 %v659, %v707
    %v750 = vadd.f32 %v660, %v707
    %v751 = vadd.f32 %v661, %v707
    %v752 = vadd.f32 %v662, %v707
    %v753 = vadd.f32 %v663, %v712
    %v754 = vadd.f32 %v664, %v712
    %v755 = vadd.f32 %v665, %v712
    %v756 = vadd.f32 %v666, %v712
    %v757 = vadd.f32 %v667, %v717
    %v758 = vadd.f32 %v668, %v717
    %v759 = vadd.f32 %v669, %v717
    %v760 = vadd.f32 %v670, %v717
    %v761 = vadd.f32 %v671, %v722
    %v762 = vadd.f32 %v672, %v722
    %v763 = vadd.f32 %v673, %v722
    %v764 = vadd.f32 %v674, %v722
    %v765 = vadd.f32 %v675, %v727
    %v766 = vadd.f32 %v676, %v727
    %v767 = vadd.f32 %v677, %v727
    %v768 = vadd.f32 %v678, %v727
    %v769 = vadd.f32 %v679, %v732
    %v770 = vadd.f32 %v680, %v732
    %v771 = vadd.f32 %v681, %v732
    %v772 = vadd.f32 %v682, %v732
    %v773 = vadd.f32 %v683, %v737
    %v774 = vadd.f32 %v684, %v737
    %v775 = vadd.f32 %v685, %v737
    %v776 = vadd.f32 %v686, %v737
    %v777 = vadd.f32 %v687, %v742
    %v778 = vadd.f32 %v688, %v742
    %v779 = vadd.f32 %v689, %v742
    %v780 = vadd.f32 %v690, %v742
    %v781 = vadd.f32 %v691, %v747
    %v782 = vadd.f32 %v692, %v747
    %v783 = vadd.f32 %v693, %v747
    %v784 = vadd.f32 %v694, %v747
    %v785 = vld [vmem:[%s6] sm:$0xff]
    %v786 = vld [vmem:[%s6 + $0x8] sm:$0xff]
    %v787 = vld [vmem:[%s6 + $0x10] sm:$0xff]
    %vm788 = vcmask 588800
    %v790 = vsel %vm788, %v785, 0
    %v793 = vsel %vm788, %v786, 0
    %v796 = vsel %vm788, %v787, 0
    %798 = vmatprep.subr.mxu0 0.0
    %799 = vmatpush1.msra.mxu0 0.0
    %800 = vmatprep.subr.mxu0 0.0
    %801 = vmatpush1.msra.mxu0 0.0
    %802 = vmatprep.subr.mxu0 0.0
    %803 = vmatpush1.msra.mxu0 0.0
    %804 = vmatprep.subr.mxu0 0.0
    %805 = vmatpush1.msra.mxu0 0.0
    %806 = vmatprep.subr.mxu0 0.0
    %807 = vmatpush1.msra.mxu0 0.0
    %808 = vmatprep.subr.mxu0 0.0
    %809 = vmatpush1.msra.mxu0 0.0
    %810 = vmatprep.subr.mxu0 0.0
    %811 = vmatpush1.msra.mxu0 0.0
    %812 = vmatprep.subr.mxu0 %v782
    %813 = vmatpush1.msra.mxu0 %v781
    %814 = vmatprep.subr.mxu0 %v778
    %815 = vmatpush1.msra.mxu0 %v777
    %816 = vmatprep.subr.mxu0 %v774
    %817 = vmatpush1.msra.mxu0 %v773
    %818 = vmatprep.subr.mxu0 %v770
    %819 = vmatpush1.msra.mxu0 %v769
    %820 = vmatprep.subr.mxu0 %v766
    %821 = vmatpush1.msra.mxu0 %v765
    %822 = vmatprep.subr.mxu0 %v762
    %823 = vmatpush1.msra.mxu0 %v761
    %824 = vmatprep.subr.mxu0 %v758
    %825 = vmatpush1.msra.mxu0 %v757
    %826 = vmatprep.subr.mxu0 %v754
    %827 = vmatpush1.msra.mxu0 %v753
    %828 = vmatprep.subr.mxu0 %v750
    %829 = vmatpush1.msra.mxu0 %v749
    %830 = vmatprep.subr.mxu0 0.0
    %831 = vmatpush2.msra.mxu0 0.0
    %832 = vmatprep.subr.mxu0 0.0
    %833 = vmatpush2.msra.mxu0 0.0
    %834 = vmatprep.subr.mxu0 0.0
    %835 = vmatpush2.msra.mxu0 0.0
    %836 = vmatprep.subr.mxu0 0.0
    %837 = vmatpush2.msra.mxu0 0.0
    %838 = vmatprep.subr.mxu0 0.0
    %839 = vmatpush2.msra.mxu0 0.0
    %840 = vmatprep.subr.mxu0 0.0
    %841 = vmatpush2.msra.mxu0 0.0
    %842 = vmatprep.subr.mxu0 0.0
    %843 = vmatpush2.msra.mxu0 0.0
    %844 = vmatprep.subr.mxu0 0.0
    %845 = vmatpush2.msra.mxu0 0.0
    %846 = vmatprep.subr.mxu0 0.0
    %847 = vmatpush2.msra.mxu0 0.0
    %848 = vmatprep.subr.mxu0 0.0
    %849 = vmatpush2.msra.mxu0 0.0
    %850 = vmatprep.subr.mxu0 0.0
    %851 = vmatpush2.msra.mxu0 0.0
    %852 = vmatprep.subr.mxu0 0.0
    %853 = vmatpush2.msra.mxu0 0.0
    %854 = vmatprep.subr.mxu0 0.0
    %855 = vmatpush2.msra.mxu0 0.0
    %856 = vmatprep.subr.mxu0 0.0
    %857 = vmatpush2.msra.mxu0 0.0
    %858 = vmatprep.subr.mxu0 0.0
    %859 = vmatpush2.msra.mxu0 0.0
    %860 = vmatprep.subr.mxu0 0.0
    %861 = vmatpush2.msra.mxu0 0.0
    %862 = vmatprep.mubr.f32.mxu0 0.0
    %863 = vmatmul.mubr.f32.gmra.mxu0 %v790
    %v864 = vpop.f32.mrf.mxu0
    %v865 = vadd.f32 0.0, %v864
    %v866 = vpop.f32.mrf.mxu0
    %v867 = vadd.f32 0.0, %v866
    %868 = vmatprep.mubr.f32.mxu0 0.0
    %869 = vmatmul.mubr.f32.gmra.mxu0 %v793
    %v870 = vpop.f32.mrf.mxu0
    %v871 = vadd.f32 0.0, %v870
    %v872 = vpop.f32.mrf.mxu0
    %v873 = vadd.f32 0.0, %v872
    %874 = vmatprep.mubr.f32.mxu0 0.0
    %875 = vmatmul.mubr.f32.gmra.mxu0 %v796
    %v876 = vpop.f32.mrf.mxu0
    %v877 = vadd.f32 0.0, %v876
    %v878 = vpop.f32.mrf.mxu0
    %v879 = vadd.f32 0.0, %v878
    %880 = vdwg.mxu0
    %881 = vmatprep.subr.mxu0 0.0
    %882 = vmatpush1.msra.mxu0 0.0
    %883 = vmatprep.subr.mxu0 0.0
    %884 = vmatpush1.msra.mxu0 0.0
    %885 = vmatprep.subr.mxu0 0.0
    %886 = vmatpush1.msra.mxu0 0.0
    %887 = vmatprep.subr.mxu0 0.0
    %888 = vmatpush1.msra.mxu0 0.0
    %889 = vmatprep.subr.mxu0 0.0
    %890 = vmatpush1.msra.mxu0 0.0
    %891 = vmatprep.subr.mxu0 0.0
    %892 = vmatpush1.msra.mxu0 0.0
    %893 = vmatprep.subr.mxu0 0.0
    %894 = vmatpush1.msra.mxu0 0.0
    %895 = vmatprep.subr.mxu0 %v784
    %896 = vmatpush1.msra.mxu0 %v783
    %897 = vmatprep.subr.mxu0 %v780
    %898 = vmatpush1.msra.mxu0 %v779
    %899 = vmatprep.subr.mxu0 %v776
    %900 = vmatpush1.msra.mxu0 %v775
    %901 = vmatprep.subr.mxu0 %v772
    %902 = vmatpush1.msra.mxu0 %v771
    %903 = vmatprep.subr.mxu0 %v768
    %904 = vmatpush1.msra.mxu0 %v767
    %905 = vmatprep.subr.mxu0 %v764
    %906 = vmatpush1.msra.mxu0 %v763
    %907 = vmatprep.subr.mxu0 %v760
    %908 = vmatpush1.msra.mxu0 %v759
    %909 = vmatprep.subr.mxu0 %v756
    %910 = vmatpush1.msra.mxu0 %v755
    %911 = vmatprep.subr.mxu0 %v752
    %912 = vmatpush1.msra.mxu0 %v751
    %913 = vmatprep.subr.mxu0 0.0
    %914 = vmatpush2.msra.mxu0 0.0
    %915 = vmatprep.subr.mxu0 0.0
    %916 = vmatpush2.msra.mxu0 0.0
    %917 = vmatprep.subr.mxu0 0.0
    %918 = vmatpush2.msra.mxu0 0.0
    %919 = vmatprep.subr.mxu0 0.0
    %920 = vmatpush2.msra.mxu0 0.0
    %921 = vmatprep.subr.mxu0 0.0
    %922 = vmatpush2.msra.mxu0 0.0
    %923 = vmatprep.subr.mxu0 0.0
    %924 = vmatpush2.msra.mxu0 0.0
    %925 = vmatprep.subr.mxu0 0.0
    %926 = vmatpush2.msra.mxu0 0.0
    %927 = vmatprep.subr.mxu0 0.0
    %928 = vmatpush2.msra.mxu0 0.0
    %929 = vmatprep.subr.mxu0 0.0
    %930 = vmatpush2.msra.mxu0 0.0
    %931 = vmatprep.subr.mxu0 0.0
    %932 = vmatpush2.msra.mxu0 0.0
    %933 = vmatprep.subr.mxu0 0.0
    %934 = vmatpush2.msra.mxu0 0.0
    %935 = vmatprep.subr.mxu0 0.0
    %936 = vmatpush2.msra.mxu0 0.0
    %937 = vmatprep.subr.mxu0 0.0
    %938 = vmatpush2.msra.mxu0 0.0
    %939 = vmatprep.subr.mxu0 0.0
    %940 = vmatpush2.msra.mxu0 0.0
    %941 = vmatprep.subr.mxu0 0.0
    %942 = vmatpush2.msra.mxu0 0.0
    %943 = vmatprep.subr.mxu0 0.0
    %944 = vmatpush2.msra.mxu0 0.0
    %945 = vmatprep.mubr.f32.mxu0 0.0
    %946 = vmatmul.mubr.f32.gmra.mxu0 %v790
    %v947 = vpop.f32.mrf.mxu0
    %v948 = vadd.f32 0.0, %v947
    %v949 = vpop.f32.mrf.mxu0
    %v950 = vadd.f32 0.0, %v949
    %951 = vmatprep.mubr.f32.mxu0 0.0
    %952 = vmatmul.mubr.f32.gmra.mxu0 %v793
    %v953 = vpop.f32.mrf.mxu0
    %v954 = vadd.f32 0.0, %v953
    %v955 = vpop.f32.mrf.mxu0
    %v956 = vadd.f32 0.0, %v955
    %957 = vmatprep.mubr.f32.mxu0 0.0
    %958 = vmatmul.mubr.f32.gmra.mxu0 %v796
    %v959 = vpop.f32.mrf.mxu0
    %v960 = vadd.f32 0.0, %v959
    %v961 = vpop.f32.mrf.mxu0
    %v962 = vadd.f32 0.0, %v961
    %963 = vdwg.mxu0
    %v964 = vmax.f32 %v865, 0.0
    %v965 = vmax.f32 %v867, 0.0
    %v966 = vmax.f32 %v948, 0.0
    %v967 = vmax.f32 %v950, 0.0
    %v968 = vmax.f32 %v871, 0.0
    %v969 = vmax.f32 %v873, 0.0
    %v970 = vmax.f32 %v954, 0.0
    %v971 = vmax.f32 %v956, 0.0
    %v972 = vmax.f32 %v877, 0.0
    %v973 = vmax.f32 %v879, 0.0
    %v974 = vmax.f32 %v960, 0.0
    %v975 = vmax.f32 %v962, 0.0
    %976 = vst [vmem:[#allocation2] sm:$0xff] %v964
    %977 = vst [vmem:[#allocation2 + $0x8] sm:$0xff] %v965
    %978 = vst [vmem:[#allocation2 + $0x10] sm:$0xff] %v966
    %979 = vst [vmem:[#allocation2 + $0x18] sm:$0xff] %v967
    %980 = vst [vmem:[#allocation2 + $0x20] sm:$0xff] %v968
    %981 = vst [vmem:[#allocation2 + $0x28] sm:$0xff] %v969
    %982 = vst [vmem:[#allocation2 + $0x30] sm:$0xff] %v970
    %983 = vst [vmem:[#allocation2 + $0x38] sm:$0xff] %v971
    %984 = vst [vmem:[#allocation2 + $0x40] sm:$0xff] %v972
    %985 = vst [vmem:[#allocation2 + $0x48] sm:$0xff] %v973
    %986 = vst [vmem:[#allocation2 + $0x50] sm:$0xff] %v974
    %987 = vst [vmem:[#allocation2 + $0x58] sm:$0xff] %v975
    // Predicated region
    $region30: #{tpu_custom_call.1} parent=1 // pred_check
      _
    $region31: #{tpu_custom_call.1} parent=1 // pred_check_branch
      %989 = sbr.rel (0) target = $region33
    $region32: #{tpu_custom_call.1} parent=1 // pred_region
      %s991 = ssub.s32 1536, 1536
      %992 = vsyncadd [#allocation3], %s991
      %s993 = sshll.u32 [#allocation2], 4
      %s994 = int_to_ptr.vmem [resolvable:$true] %s993
      %999 = dma.vmem_to_hbm [thread:$0]  %s994, 1536, %s7, [#allocation3], 512, 512, 32
    $region33: #{tpu_custom_call.1} parent=1 // pred_fallthru
      _
    // Predicated region
    $region34: #{tpu_custom_call.1} parent=1 // pred_check
      _
    $region35: #{tpu_custom_call.1} parent=1 // pred_check_branch
      %1001 = sbr.rel (0) target = $region37
    $region36: #{tpu_custom_call.1} parent=1 // pred_region
      %1002 = dma.done [#allocation3], 1536
    $region37: #{tpu_custom_call.1} parent=1 // pred_fallthru
      _
    %1003 = vsyncpa [#allocation3], 1

</llo_original>
